<compile_context>
chip_gen: v7x
topology: tpu7x:2x2x1
jax: 0.10.0
libtpu: 0.0.40
codegen_flags: <defaults>
</compile_context>

<pallas_src>
import jax
import jax.numpy as jnp
from jax.experimental import pallas as pl
from jax.experimental.pallas import tpu as pltpu


def _round_up(n, m):
    return ((n + m - 1) // m) * m


def _choose_tile_b(B):
    """Lane-dense batch tile.

    Prefer >=2 grid steps (dual-TC on v7x; zero cost on single-TC v5e/v6e),
    cap at 8192 lanes so double-buffered (d_in + d_x) row streams stay well
    under the scoped-VMEM default on every generation.
    """
    B128 = _round_up(B, 128)
    if B128 <= 128:
        return B128
    half = _round_up((B128 + 1) // 2, 128)
    return min(half, 8192)


def _silu(h):
    # SiLU = h * sigmoid(h).  Exact divide keeps f32 parity with the PyTorch
    # module; swap the divide for pl.reciprocal(..., approx=True) only if the
    # kernel ever becomes VALU-bound (it is stream/step-bound at these sizes).
    return h * (1.0 / (1.0 + jnp.exp(-h)))


def velocity_kernel(in_ref, w1_ref, b1_ref, w2_ref, b2_ref, w3_ref, b3_ref,
                    out_ref):
    """Transposed 3-layer MLP: activations are (features, tile_b), batch on lanes."""
    x = in_ref[...].astype(jnp.float32)                       # (d_in, TB)
    h = jnp.dot(w1_ref[...], x, preferred_element_type=jnp.float32) + b1_ref[...]
    h = _silu(h)
    h = _silu(jnp.dot(w2_ref[...], h, preferred_element_type=jnp.float32)
              + b2_ref[...])
    out = jnp.dot(w3_ref[...], h, preferred_element_type=jnp.float32) + b3_ref[...]
    out_ref[...] = out.astype(out_ref.dtype)


def prepare_params(params):
    """One-time weight prep.  Hoist this OUT of any ODE-solver hot loop.

    * conditional normalization folded into W1's conditional rows + bias
    * weights transposed to (out_features, in_features) for batch-on-lanes
    * layer-1 assembled for both the scalar-t ([x;c], t folded into bias) and
      per-sample-t ([x;t;c]) variants
    """
    (w1, b1, w2, b2, w3, b3, cshift, cscale) = params
    w1 = jnp.asarray(w1, jnp.float32); b1 = jnp.asarray(b1, jnp.float32)
    w2 = jnp.asarray(w2, jnp.float32); b2 = jnp.asarray(b2, jnp.float32)
    w3 = jnp.asarray(w3, jnp.float32); b3 = jnp.asarray(b3, jnp.float32)
    cshift = jnp.asarray(cshift, jnp.float32)
    cscale = jnp.asarray(cscale, jnp.float32)

    d_c = cshift.shape[0]
    d_in_raw, h1 = w1.shape
    h2 = w2.shape[1]
    d_x = d_in_raw - 1 - d_c

    cinv = 1.0 / cscale                      # inf on zero scale, same as torch division
    w1x = w1[:d_x, :]                        # (d_x, h1)
    w1t = w1[d_x, :]                         # (h1,)
    w1c_raw = w1[d_x + 1:, :]                # (d_c, h1)
    w1c = w1c_raw * cinv[:, None]            # scale folded into weights
    b1_base = b1 - (cshift * cinv) @ w1c_raw  # shift folded into bias

    return dict(
        d_x=d_x, d_c=d_c, h1=h1, h2=h2,
        w1T_xc=jnp.concatenate([w1x, w1c], axis=0).T,                  # (h1, d_x+d_c)
        w1T_xtc=jnp.concatenate([w1x, w1t[None, :], w1c], axis=0).T,   # (h1, d_x+1+d_c)
        w1t=w1t,
        b1_base=b1_base,
        w2T=w2.T, b2c=b2.reshape(h2, 1),
        w3T=w3.T, b3c=b3.reshape(d_x, 1),
    )


def reference_forward(t, x, conditional, params):
    """Pure-JAX reference matching the PyTorch forward exactly."""
    (w1, b1, w2, b2, w3, b3, cshift, cscale) = params
    c = (conditional - cshift) / cscale
    t_col = jnp.broadcast_to(
        jnp.reshape(jnp.asarray(t, x.dtype), (-1, 1)), (x.shape[0], 1))
    inputs = jnp.concatenate([x, t_col, c], axis=1)
    h = jax.nn.silu(inputs @ w1 + b1)
    h = jax.nn.silu(h @ w2 + b2)
    return h @ w3 + b3, jnp.zeros_like(conditional)


def conditional_ode_flow_forward(t, x, conditional, params, *, prepared=None,
                                 tile_b=None, min_pallas_batch=128):
    """Pallas implementation of ConditionalODEFlow.forward / dynamics.

    Returns (dxdt, zeros_like(conditional)), matching the PyTorch module.
    Pass `prepared=prepare_params(params)` once and reuse it across solver
    steps to keep weight prep out of the hot loop.
    """
    B, d_x = x.shape
    d_c = conditional.shape[1]

    # Tiny batches: pad/transpose + launch overhead dwarf the ~KFLOP of work;
    # run the identical plain-JAX math instead.
    if B < min_pallas_batch:
        return reference_forward(t, x, conditional, params)

    if prepared is None:
        prepared = prepare_params(params)
    p = prepared
    assert p["d_x"] == d_x and p["d_c"] == d_c
    h1, h2 = p["h1"], p["h2"]

    t_arr = jnp.asarray(t, dtype=jnp.float32)
    scalar_t = t_arr.size == 1

    if tile_b is None:
        tile_b = _choose_tile_b(B)
    assert tile_b % 128 == 0, "tile_b must be a multiple of 128 (lane width)"
    B_pad = _round_up(B, tile_b)
    grid = (B_pad // tile_b,)
    pad = B_pad - B

    # Single fused layer-1 input block: one concat + one pad + one transpose.
    # TODO(synk): an ODE-solver loop (sample/log_prob) should keep x/conditional
    # in this (features, B_pad) layout across steps to avoid per-step transposes.
    if scalar_t:
        inp = jnp.concatenate([x, conditional], axis=1)              # (B, d_x+d_c)
        w1T = p["w1T_xc"]
        b1_eff = p["b1_base"] + t_arr.reshape(()) * p["w1t"]         # t -> bias
    else:
        inp = jnp.concatenate([x, t_arr.reshape(-1, 1), conditional], axis=1)
        w1T = p["w1T_xtc"]
        b1_eff = p["b1_base"]
    d_in = inp.shape[1]
    inT = jnp.pad(inp, ((0, pad), (0, 0))).T                         # (d_in, B_pad)
    b1c = b1_eff.reshape(h1, 1)

    def batch_spec(rows):
        return pl.BlockSpec((rows, tile_b), lambda i: (0, i))

    def full_spec(shape):
        return pl.BlockSpec(shape, lambda i: (0, 0))

    flops = 2 * B_pad * (d_in * h1 + h1 * h2 + h2 * d_x)
    bytes_accessed = 4 * (B_pad * (d_in + d_x)
                          + h1 * d_in + h1 + h1 * h2 + h2 + h2 * d_x + d_x)
    cost = pl.CostEstimate(flops=flops,
                           transcendentals=B_pad * (h1 + h2),
                           bytes_accessed=bytes_accessed)

    outT = pl.pallas_call(
        velocity_kernel,
        out_shape=jax.ShapeDtypeStruct((d_x, B_pad), x.dtype),
        grid_spec=pltpu.PrefetchScalarGridSpec(
            num_scalar_prefetch=0,
            grid=grid,
            in_specs=[batch_spec(d_in),
                      full_spec((h1, d_in)), full_spec((h1, 1)),
                      full_spec((h2, h1)), full_spec((h2, 1)),
                      full_spec((d_x, h2)), full_spec((d_x, 1))],
            out_specs=batch_spec(d_x),
        ),
        compiler_params=pltpu.CompilerParams(
            dimension_semantics=("parallel",)),
        cost_estimate=cost,
    )(inT, w1T, b1c, p["w2T"], p["b2c"], p["w3T"], p["b3c"])

    dxdt = outT[:, :B].T                                             # slice, then transpose
    return dxdt, jnp.zeros_like(conditional)


def init_params(key, target_dim, cond_dim, hidden_units, *,
                cond_shift=None, cond_scale=None):
    """Deterministic init matching PyTorch nn.Linear default (U[-1/sqrt(in), 1/sqrt(in)]).

    Weights stored as (in_features, out_features): y = x @ W + b.
    """
    arch = [target_dim + 1 + cond_dim] + list(hidden_units) + [target_dim]
    params = []
    for i in range(len(arch) - 1):
        fan_in, fan_out = arch[i], arch[i + 1]
        key, kw, kb = jax.random.split(key, 3)
        bound = 1.0 / jnp.sqrt(fan_in)
        w = jax.random.uniform(kw, (fan_in, fan_out), jnp.float32, -bound, bound)
        b = jax.random.uniform(kb, (fan_out,), jnp.float32, -bound, bound)
        params += [w, b]
    cshift = (jnp.zeros((cond_dim,), jnp.float32)
              if cond_shift is None else jnp.asarray(cond_shift, jnp.float32))
    cscale = (jnp.ones((cond_dim,), jnp.float32)
              if cond_scale is None else jnp.asarray(cond_scale, jnp.float32))
    return tuple(params) + (cshift, cscale)


# TODO(synk): the odeint solver loop (sample/log_prob/solve_ode_forward) and the
# autograd-based Jacobian divergence (dynamics_with_jacobian) are host-level
# control flow / autodiff and are intentionally not implemented as Pallas kernels.

if __name__ == "__main__":
    target_dim = 4
    cond_dim = 3
    hidden_units = [32, 32]

    key = jax.random.PRNGKey(0)
    key, kx, kc, kt, kt2, kp, ks1, ks2 = jax.random.split(key, 8)

    # Non-trivial conditional normalization to exercise the weight fold.
    cond_shift = jax.random.normal(ks1, (cond_dim,), jnp.float32)
    cond_scale = jax.random.uniform(ks2, (cond_dim,), jnp.float32, 0.5, 1.5)
    params = init_params(kp, target_dim, cond_dim, hidden_units,
                         cond_shift=cond_shift, cond_scale=cond_scale)
    prepared = prepare_params(params)        # one-time prep (hoisted out of the hot loop)

    # ---- Pallas path, moderate batch (>= min_pallas_batch, grid has 2 steps) ----
    batch = 256
    x = jax.random.normal(kx, (batch, target_dim), jnp.float32)
    conditional = jax.random.normal(kc, (batch, cond_dim), jnp.float32)

    # Scalar time (odeint / sample() case): t folded into the layer-1 bias.
    t_scalar = jax.random.uniform(kt, (), jnp.float32)
    dxdt, dcond = conditional_ode_flow_forward(t_scalar, x, conditional, params,
                                               prepared=prepared)
    jax.block_until_ready(dxdt)
    ref_dxdt, ref_dcond = reference_forward(t_scalar, x, conditional, params)
    assert dxdt.shape == (batch, target_dim)
    assert dcond.shape == conditional.shape
    assert jnp.allclose(dxdt, ref_dxdt, atol=2e-5, rtol=2e-5)
    assert jnp.allclose(dcond, ref_dcond)

    # Per-sample time (flow_matching_loss case): t is a row of the fused input.
    t_batch = jax.random.uniform(kt2, (batch, 1), jnp.float32)
    dxdt_b, _ = conditional_ode_flow_forward(t_batch, x, conditional, params,
                                             prepared=prepared)
    jax.block_until_ready(dxdt_b)
    ref_b, _ = reference_forward(t_batch, x, conditional, params)
    assert jnp.allclose(dxdt_b, ref_b, atol=2e-5, rtol=2e-5)

    # ---- Pallas path forced at a tiny batch (single padded tile) ----
    x_s = x[:16]
    c_s = conditional[:16]
    dxdt_s, _ = conditional_ode_flow_forward(t_scalar, x_s, c_s, params,
                                             prepared=prepared, min_pallas_batch=0)
    jax.block_until_ready(dxdt_s)
    ref_s, _ = reference_forward(t_scalar, x_s, c_s, params)
    assert jnp.allclose(dxdt_s, ref_s, atol=2e-5, rtol=2e-5)

    # ---- Small-batch fallback path (plain JAX, same semantics) ----
    dxdt_f, dcond_f = conditional_ode_flow_forward(t_scalar, x_s, c_s, params)
    jax.block_until_ready(dxdt_f)
    assert jnp.allclose(dxdt_f, ref_s, atol=1e-6, rtol=1e-6)
    assert dcond_f.shape == c_s.shape

    print("KERNEL_OK")
</pallas_src>

<mosaic_0001>
module attributes {stable_mosaic.version = 11 : i64} {
  func.func @velocity_kernel(%arg0: i32, %arg1: memref<7x128xf32, #tpu.memory_space<vmem>>, %arg2: memref<32x7xf32, #tpu.memory_space<vmem>>, %arg3: memref<32x1xf32, #tpu.memory_space<vmem>>, %arg4: memref<32x32xf32, #tpu.memory_space<vmem>>, %arg5: memref<32x1xf32, #tpu.memory_space<vmem>>, %arg6: memref<4x32xf32, #tpu.memory_space<vmem>>, %arg7: memref<4x1xf32, #tpu.memory_space<vmem>>, %arg8: memref<4x128xf32, #tpu.memory_space<vmem>>) attributes {dimension_semantics = [#tpu.dimension_semantics<parallel>], iteration_bounds = array<i64: 2>, scalar_prefetch = 0 : i64, scratch_operands = 0 : i64, tpu.core_type = #tpu.core_type<tc>, window_params = [{transform_indices = @transform_0, window_bounds = array<i64: 7, 128>}, {pipeline_mode = #tpu.pipeline_mode<synchronous>, transform_indices = @transform_1, window_bounds = array<i64: 32, 7>}, {pipeline_mode = #tpu.pipeline_mode<synchronous>, transform_indices = @transform_2, window_bounds = array<i64: 32, 1>}, {pipeline_mode = #tpu.pipeline_mode<synchronous>, transform_indices = @transform_3, window_bounds = array<i64: 32, 32>}, {pipeline_mode = #tpu.pipeline_mode<synchronous>, transform_indices = @transform_4, window_bounds = array<i64: 32, 1>}, {pipeline_mode = #tpu.pipeline_mode<synchronous>, transform_indices = @transform_5, window_bounds = array<i64: 4, 32>}, {pipeline_mode = #tpu.pipeline_mode<synchronous>, transform_indices = @transform_6, window_bounds = array<i64: 4, 1>}, {transform_indices = @transform_7, window_bounds = array<i64: 4, 128>}]} {
    %c0 = arith.constant 0 : index
    %c0_0 = arith.constant 0 : index
    %0 = vector.load %arg1[%c0, %c0_0] : memref<7x128xf32, #tpu.memory_space<vmem>>, vector<7x128xf32>
    %c0_1 = arith.constant 0 : index
    %c0_2 = arith.constant 0 : index
    %1 = vector.load %arg2[%c0_1, %c0_2] : memref<32x7xf32, #tpu.memory_space<vmem>>, vector<32x7xf32>
    %cst = arith.constant dense<0.000000e+00> : vector<32x128xf32>
    %2 = tpu.matmul %1, %0, %cst {dimension_numbers = #tpu.dot_dimension_numbers<[1], [0], [0], [1], [0, 0, 1, 1], [], []>} : vector<32x7xf32>, vector<7x128xf32>, vector<32x128xf32> -> vector<32x128xf32>
    %c0_3 = arith.constant 0 : index
    %c0_4 = arith.constant 0 : index
    %3 = vector.load %arg3[%c0_3, %c0_4] : memref<32x1xf32, #tpu.memory_space<vmem>>, vector<32x1xf32>
    %4 = vector.broadcast %3 : vector<32x1xf32> to vector<32x128xf32>
    %5 = arith.addf %2, %4 : vector<32x128xf32>
    %cst_5 = arith.constant 0.000000e+00 : f32
    %6 = vector.broadcast %cst_5 : f32 to vector<32x128xf32>
    %7 = arith.subf %6, %5 : vector<32x128xf32>
    %8 = math.exp %7 : vector<32x128xf32>
    %cst_6 = arith.constant 1.000000e+00 : f32
    %9 = vector.broadcast %cst_6 : f32 to vector<32x128xf32>
    %10 = arith.addf %9, %8 : vector<32x128xf32>
    %cst_7 = arith.constant 1.000000e+00 : f32
    %11 = vector.broadcast %cst_7 : f32 to vector<32x128xf32>
    %12 = arith.divf %11, %10 : vector<32x128xf32>
    %13 = arith.mulf %5, %12 : vector<32x128xf32>
    %c0_8 = arith.constant 0 : index
    %c0_9 = arith.constant 0 : index
    %14 = vector.load %arg4[%c0_8, %c0_9] : memref<32x32xf32, #tpu.memory_space<vmem>>, vector<32x32xf32>
    %cst_10 = arith.constant dense<0.000000e+00> : vector<32x128xf32>
    %15 = tpu.matmul %14, %13, %cst_10 {dimension_numbers = #tpu.dot_dimension_numbers<[1], [0], [0], [1], [0, 0, 1, 1], [], []>} : vector<32x32xf32>, vector<32x128xf32>, vector<32x128xf32> -> vector<32x128xf32>
    %c0_11 = arith.constant 0 : index
    %c0_12 = arith.constant 0 : index
    %16 = vector.load %arg5[%c0_11, %c0_12] : memref<32x1xf32, #tpu.memory_space<vmem>>, vector<32x1xf32>
    %17 = vector.broadcast %16 : vector<32x1xf32> to vector<32x128xf32>
    %18 = arith.addf %15, %17 : vector<32x128xf32>
    %cst_13 = arith.constant 0.000000e+00 : f32
    %19 = vector.broadcast %cst_13 : f32 to vector<32x128xf32>
    %20 = arith.subf %19, %18 : vector<32x128xf32>
    %21 = math.exp %20 : vector<32x128xf32>
    %cst_14 = arith.constant 1.000000e+00 : f32
    %22 = vector.broadcast %cst_14 : f32 to vector<32x128xf32>
    %23 = arith.addf %22, %21 : vector<32x128xf32>
    %cst_15 = arith.constant 1.000000e+00 : f32
    %24 = vector.broadcast %cst_15 : f32 to vector<32x128xf32>
    %25 = arith.divf %24, %23 : vector<32x128xf32>
    %26 = arith.mulf %18, %25 : vector<32x128xf32>
    %c0_16 = arith.constant 0 : index
    %c0_17 = arith.constant 0 : index
    %27 = vector.load %arg6[%c0_16, %c0_17] : memref<4x32xf32, #tpu.memory_space<vmem>>, vector<4x32xf32>
    %cst_18 = arith.constant dense<0.000000e+00> : vector<4x128xf32>
    %28 = tpu.matmul %27, %26, %cst_18 {dimension_numbers = #tpu.dot_dimension_numbers<[1], [0], [0], [1], [0, 0, 1, 1], [], []>} : vector<4x32xf32>, vector<32x128xf32>, vector<4x128xf32> -> vector<4x128xf32>
    %c0_19 = arith.constant 0 : index
    %c0_20 = arith.constant 0 : index
    %29 = vector.load %arg7[%c0_19, %c0_20] : memref<4x1xf32, #tpu.memory_space<vmem>>, vector<4x1xf32>
    %30 = vector.broadcast %29 : vector<4x1xf32> to vector<4x128xf32>
    %31 = arith.addf %28, %30 : vector<4x128xf32>
    %c0_21 = arith.constant 0 : index
    %c0_22 = arith.constant 0 : index
    %32 = vector.load %arg8[%c0_21, %c0_22] : memref<4x128xf32, #tpu.memory_space<vmem>>, vector<4x128xf32>
    tpu.vector_store %arg8[%c0_21, %c0_22], %31 {strides = array<i32>} : memref<4x128xf32, #tpu.memory_space<vmem>>, vector<4x128xf32>,
    return
  }
  func.func @transform_0(%arg0: i32) -> (i32, i32) {
    %c0_i32 = arith.constant 0 : i32
    %c0_i32_0 = arith.constant 0 : i32
    return %c0_i32, %arg0 : i32, i32
  }
  func.func @transform_1(%arg0: i32) -> (i32, i32) {
    %c0_i32 = arith.constant 0 : i32
    %c0_i32_0 = arith.constant 0 : i32
    %c0_i32_1 = arith.constant 0 : i32
    return %c0_i32, %c0_i32_0 : i32, i32
  }
  func.func @transform_2(%arg0: i32) -> (i32, i32) {
    %c0_i32 = arith.constant 0 : i32
    %c0_i32_0 = arith.constant 0 : i32
    %c0_i32_1 = arith.constant 0 : i32
    return %c0_i32, %c0_i32_0 : i32, i32
  }
  func.func @transform_3(%arg0: i32) -> (i32, i32) {
    %c0_i32 = arith.constant 0 : i32
    %c0_i32_0 = arith.constant 0 : i32
    %c0_i32_1 = arith.constant 0 : i32
    return %c0_i32, %c0_i32_0 : i32, i32
  }
  func.func @transform_4(%arg0: i32) -> (i32, i32) {
    %c0_i32 = arith.constant 0 : i32
    %c0_i32_0 = arith.constant 0 : i32
    %c0_i32_1 = arith.constant 0 : i32
    return %c0_i32, %c0_i32_0 : i32, i32
  }
  func.func @transform_5(%arg0: i32) -> (i32, i32) {
    %c0_i32 = arith.constant 0 : i32
    %c0_i32_0 = arith.constant 0 : i32
    %c0_i32_1 = arith.constant 0 : i32
    return %c0_i32, %c0_i32_0 : i32, i32
  }
  func.func @transform_6(%arg0: i32) -> (i32, i32) {
    %c0_i32 = arith.constant 0 : i32
    %c0_i32_0 = arith.constant 0 : i32
    %c0_i32_1 = arith.constant 0 : i32
    return %c0_i32, %c0_i32_0 : i32, i32
  }
  func.func @transform_7(%arg0: i32) -> (i32, i32) {
    %c0_i32 = arith.constant 0 : i32
    %c0_i32_0 = arith.constant 0 : i32
    return %c0_i32, %arg0 : i32, i32
  }
}

</mosaic_0001>

<llo_original>
// kernel: tpu_custom_call.1
$region0: #{tpu_custom_call.1}
  #allocation0 [shape = 'u32[]', space=smem, size = 0x4, offset = 0x4, fixed_abs, tag = 'smem constant byte address 0x4 - core index']
  #allocation1 [shape = 'u32[144,128]{1,0:T(1,128)}', space=vmem, size = 0x12000, scoped, tag = 'internal scratch']
  %s0 = inlined_call_operand.vmem [shape: f32[7,256], index: 0, kind: input, shape index: {}]
  %s1 = inlined_call_operand.vmem [shape: f32[32,7], index: 1, kind: input, shape index: {}]
  %s2 = inlined_call_operand.vmem [shape: f32[32,1], index: 2, kind: input, shape index: {}]
  %s3 = inlined_call_operand.vmem [shape: f32[32,32], index: 3, kind: input, shape index: {}]
  %s4 = inlined_call_operand.vmem [shape: f32[32,1], index: 4, kind: input, shape index: {}]
  %s5 = inlined_call_operand.vmem [shape: f32[4,32], index: 5, kind: input, shape index: {}]
  %s6 = inlined_call_operand.vmem [shape: f32[4,1], index: 6, kind: input, shape index: {}]
  %s7 = inlined_call_operand.hbm [shape: f32[4,256], index: 7, kind: output, shape index: {}]
  %s8 = sld [smem:[#allocation0]]
  $region61: #{tpu_custom_call.1} parent=0
    _
  %s10 = ssub.s32 1, %s8
  %s11 = scalar_select 0, %s10, %s8
  $region1: #{tpu_custom_call.1} parent=0
    #allocation2 [shape = 'u8[4096]{0}', space=vmem, size = 0x1000, scoped, tag = 'output window, operand 0']
    #allocation3 [shape = 's32[2]{0}', space=sflag, size = 0x8, scoped, tag = 'scoped memory for tpu_custom_call.1']
    %12 = vsyncpa [#allocation3], 0
    %s13 = scalar_lea.sflag [#allocation3], 1
    %14 = vsyncpa %s13, 0
    loop: start=0, step=1, limit=4
    $region2: #{tpu_custom_call.1} parent=1 // loop_pre_header
      _
    $region3: #{tpu_custom_call.1} parent=1 // loop_header
      %s16 = sphi 0, %s20
      %p17 = scmp.ge.s32.totalorder %s16, 4
      %s26 = sphi 0, %s28
      %s29 = sphi 0, %s26
      %s30 = sphi 0, %s29
      %s46 = sphi 0, %s30
      %s50 = sphi 0, %s50
      %s52 = sphi 0, %s50
      %s53 = sphi 0, %s52
      %s67 = sphi 0, %s53
      %s71 = sphi 0, %s71
      %s73 = sphi 0, %s71
      %s74 = sphi 0, %s73
      %s88 = sphi 0, %s74
      %s92 = sphi 0, %s92
      %s94 = sphi 0, %s92
      %s95 = sphi 0, %s94
      %s109 = sphi 0, %s95
      %s113 = sphi 0, %s113
      %s115 = sphi 0, %s113
      %s116 = sphi 0, %s115
      %s130 = sphi 0, %s116
      %s134 = sphi 0, %s134
      %s136 = sphi 0, %s134
      %s137 = sphi 0, %s136
      %s151 = sphi 0, %s137
      %s155 = sphi 0, %s155
      %s157 = sphi 0, %s155
      %s158 = sphi 0, %s157
      %s172 = sphi 0, %s158
      %s178 = sphi 0, %s180
      %s181 = sphi 0, %s178
      %s182 = sphi 0, %s181
      %s198 = sphi 0, %s182
    $region4: #{tpu_custom_call.1} parent=1 // loop_header_branch
      %19 = sbr.rel (%p17) target = $region8
    $region5: #{tpu_custom_call.1} parent=1 // loop_body
      %s21 = ssub.s32 %s16, 1
      %s22 = ssub.s32 %s16, 2
      %s23 = sadd.s32 %s16, 1
      %s24 = ssub.s32 %s16, %s23
      %p25 = scmp.eq.s32.totalorder %s24, 0
      %s27 = sadd.s32 %s26, 1
      %s28 = scalar_select %p25, %s26, %s27
      %p31 = pneg %p25
      %p32 = scmp.eq.s32.totalorder %s16, 1
      %p33 = por %p31, %p32
      %p34 = scmp.ne.s32.totalorder %s26, %s29
      %p35 = scmp.eq.s32.totalorder %s16, 0
      %p36 = por %p34, %p35
      %p37 = scmp.ne.s32.totalorder %s26, %s29
      %p38 = scmp.eq.s32.totalorder %s21, 1
      %p39 = por %p37, %p38
      %p40 = scmp.ne.s32.totalorder %s29, %s30
      %p41 = scmp.eq.s32.totalorder %s21, 0
      %p42 = por %p40, %p41
      %p43 = scmp.ne.s32.totalorder %s29, %s30
      %p44 = scmp.eq.s32.totalorder %s22, 1
      %p45 = por %p43, %p44
      %p47 = scmp.ne.s32.totalorder %s30, %s46
      %p48 = scmp.eq.s32.totalorder %s22, 0
      %p49 = por %p47, %p48
      %s51 = sadd.s32 %s50, 1
      %p54 = scmp.eq.s32.totalorder %s16, 1
      %p55 = scmp.ne.s32.totalorder %s50, %s52
      %p56 = scmp.eq.s32.totalorder %s16, 0
      %p57 = por %p55, %p56
      %p58 = scmp.ne.s32.totalorder %s50, %s52
      %p59 = scmp.eq.s32.totalorder %s21, 1
      %p60 = por %p58, %p59
      %p61 = scmp.ne.s32.totalorder %s52, %s53
      %p62 = scmp.eq.s32.totalorder %s21, 0
      %p63 = por %p61, %p62
      %p64 = scmp.ne.s32.totalorder %s52, %s53
      %p65 = scmp.eq.s32.totalorder %s22, 1
      %p66 = por %p64, %p65
      %p68 = scmp.ne.s32.totalorder %s53, %s67
      %p69 = scmp.eq.s32.totalorder %s22, 0
      %p70 = por %p68, %p69
      %s72 = sadd.s32 %s71, 1
      %p75 = scmp.eq.s32.totalorder %s16, 1
      %p76 = scmp.ne.s32.totalorder %s71, %s73
      %p77 = scmp.eq.s32.totalorder %s16, 0
      %p78 = por %p76, %p77
      %p79 = scmp.ne.s32.totalorder %s71, %s73
      %p80 = scmp.eq.s32.totalorder %s21, 1
      %p81 = por %p79, %p80
      %p82 = scmp.ne.s32.totalorder %s73, %s74
      %p83 = scmp.eq.s32.totalorder %s21, 0
      %p84 = por %p82, %p83
      %p85 = scmp.ne.s32.totalorder %s73, %s74
      %p86 = scmp.eq.s32.totalorder %s22, 1
      %p87 = por %p85, %p86
      %p89 = scmp.ne.s32.totalorder %s74, %s88
      %p90 = scmp.eq.s32.totalorder %s22, 0
      %p91 = por %p89, %p90
      %s93 = sadd.s32 %s92, 1
      %p96 = scmp.eq.s32.totalorder %s16, 1
      %p97 = scmp.ne.s32.totalorder %s92, %s94
      %p98 = scmp.eq.s32.totalorder %s16, 0
      %p99 = por %p97, %p98
      %p100 = scmp.ne.s32.totalorder %s92, %s94
      %p101 = scmp.eq.s32.totalorder %s21, 1
      %p102 = por %p100, %p101
      %p103 = scmp.ne.s32.totalorder %s94, %s95
      %p104 = scmp.eq.s32.totalorder %s21, 0
      %p105 = por %p103, %p104
      %p106 = scmp.ne.s32.totalorder %s94, %s95
      %p107 = scmp.eq.s32.totalorder %s22, 1
      %p108 = por %p106, %p107
      %p110 = scmp.ne.s32.totalorder %s95, %s109
      %p111 = scmp.eq.s32.totalorder %s22, 0
      %p112 = por %p110, %p111
      %s114 = sadd.s32 %s113, 1
      %p117 = scmp.eq.s32.totalorder %s16, 1
      %p118 = scmp.ne.s32.totalorder %s113, %s115
      %p119 = scmp.eq.s32.totalorder %s16, 0
      %p120 = por %p118, %p119
      %p121 = scmp.ne.s32.totalorder %s113, %s115
      %p122 = scmp.eq.s32.totalorder %s21, 1
      %p123 = por %p121, %p122
      %p124 = scmp.ne.s32.totalorder %s115, %s116
      %p125 = scmp.eq.s32.totalorder %s21, 0
      %p126 = por %p124, %p125
      %p127 = scmp.ne.s32.totalorder %s115, %s116
      %p128 = scmp.eq.s32.totalorder %s22, 1
      %p129 = por %p127, %p128
      %p131 = scmp.ne.s32.totalorder %s116, %s130
      %p132 = scmp.eq.s32.totalorder %s22, 0
      %p133 = por %p131, %p132
      %s135 = sadd.s32 %s134, 1
      %p138 = scmp.eq.s32.totalorder %s16, 1
      %p139 = scmp.ne.s32.totalorder %s134, %s136
      %p140 = scmp.eq.s32.totalorder %s16, 0
      %p141 = por %p139, %p140
      %p142 = scmp.ne.s32.totalorder %s134, %s136
      %p143 = scmp.eq.s32.totalorder %s21, 1
      %p144 = por %p142, %p143
      %p145 = scmp.ne.s32.totalorder %s136, %s137
      %p146 = scmp.eq.s32.totalorder %s21, 0
      %p147 = por %p145, %p146
      %p148 = scmp.ne.s32.totalorder %s136, %s137
      %p149 = scmp.eq.s32.totalorder %s22, 1
      %p150 = por %p148, %p149
      %p152 = scmp.ne.s32.totalorder %s137, %s151
      %p153 = scmp.eq.s32.totalorder %s22, 0
      %p154 = por %p152, %p153
      %s156 = sadd.s32 %s155, 1
      %p159 = scmp.eq.s32.totalorder %s16, 1
      %p160 = scmp.ne.s32.totalorder %s155, %s157
      %p161 = scmp.eq.s32.totalorder %s16, 0
      %p162 = por %p160, %p161
      %p163 = scmp.ne.s32.totalorder %s155, %s157
      %p164 = scmp.eq.s32.totalorder %s21, 1
      %p165 = por %p163, %p164
      %p166 = scmp.ne.s32.totalorder %s157, %s158
      %p167 = scmp.eq.s32.totalorder %s21, 0
      %p168 = por %p166, %p167
      %p169 = scmp.ne.s32.totalorder %s157, %s158
      %p170 = scmp.eq.s32.totalorder %s22, 1
      %p171 = por %p169, %p170
      %p173 = scmp.ne.s32.totalorder %s158, %s172
      %p174 = scmp.eq.s32.totalorder %s22, 0
      %p175 = por %p173, %p174
      %s176 = ssub.s32 %s16, %s23
      %p177 = scmp.eq.s32.totalorder %s176, 0
      %s179 = sadd.s32 %s178, 1
      %s180 = scalar_select %p177, %s178, %s179
      %p183 = pneg %p177
      %p184 = scmp.eq.s32.totalorder %s16, 1
      %p185 = por %p183, %p184
      %p186 = scmp.ne.s32.totalorder %s178, %s181
      %p187 = scmp.eq.s32.totalorder %s16, 0
      %p188 = por %p186, %p187
      %p189 = scmp.ne.s32.totalorder %s178, %s181
      %p190 = scmp.eq.s32.totalorder %s21, 1
      %p191 = por %p189, %p190
      %p192 = scmp.ne.s32.totalorder %s181, %s182
      %p193 = scmp.eq.s32.totalorder %s21, 0
      %p194 = por %p192, %p193
      %p195 = scmp.ne.s32.totalorder %s181, %s182
      %p196 = scmp.eq.s32.totalorder %s22, 1
      %p197 = por %p195, %p196
      %p199 = scmp.ne.s32.totalorder %s182, %s198
      %p200 = scmp.eq.s32.totalorder %s22, 0
      %p201 = por %p199, %p200
      %p202 = scmp.le.s32.totalorder 1, %s16
      %p203 = scmp.lt.s32.totalorder %s16, 3
      %p204 = pnand %p202, %p203
      %p205 = pneg %p204
      // Predicated region
      $region9: #{tpu_custom_call.1} parent=5 // pred_check
        _
      $region10: #{tpu_custom_call.1} parent=5 // pred_check_branch
        %207 = sbr.rel (%p204) target = $region12
      $region11: #{tpu_custom_call.1} parent=5 // pred_region
        %s208 = ssub.s32 %s16, 1
        // Predicated region
        $region13: #{tpu_custom_call.1} parent=11 // pred_check
          %p209 = pneg %p63
        $region14: #{tpu_custom_call.1} parent=11 // pred_check_branch
          %211 = sbr.rel (%p209) target = $region16
        $region15: #{tpu_custom_call.1} parent=11 // pred_region
          _
        $region16: #{tpu_custom_call.1} parent=11 // pred_fallthru
          _
        // Predicated region
        $region17: #{tpu_custom_call.1} parent=11 // pred_check
          %p212 = pneg %p84
        $region18: #{tpu_custom_call.1} parent=11 // pred_check_branch
          %214 = sbr.rel (%p212) target = $region20
        $region19: #{tpu_custom_call.1} parent=11 // pred_region
          _
        $region20: #{tpu_custom_call.1} parent=11 // pred_fallthru
          _
        // Predicated region
        $region21: #{tpu_custom_call.1} parent=11 // pred_check
          %p215 = pneg %p105
        $region22: #{tpu_custom_call.1} parent=11 // pred_check_branch
          %217 = sbr.rel (%p215) target = $region24
        $region23: #{tpu_custom_call.1} parent=11 // pred_region
          _
        $region24: #{tpu_custom_call.1} parent=11 // pred_fallthru
          _
        // Predicated region
        $region25: #{tpu_custom_call.1} parent=11 // pred_check
          %p218 = pneg %p126
        $region26: #{tpu_custom_call.1} parent=11 // pred_check_branch
          %220 = sbr.rel (%p218) target = $region28
        $region27: #{tpu_custom_call.1} parent=11 // pred_region
          _
        $region28: #{tpu_custom_call.1} parent=11 // pred_fallthru
          _
        // Predicated region
        $region29: #{tpu_custom_call.1} parent=11 // pred_check
          %p221 = pneg %p147
        $region30: #{tpu_custom_call.1} parent=11 // pred_check_branch
          %223 = sbr.rel (%p221) target = $region32
        $region31: #{tpu_custom_call.1} parent=11 // pred_region
          _
        $region32: #{tpu_custom_call.1} parent=11 // pred_fallthru
          _
        // Predicated region
        $region33: #{tpu_custom_call.1} parent=11 // pred_check
          %p224 = pneg %p168
        $region34: #{tpu_custom_call.1} parent=11 // pred_check_branch
          %226 = sbr.rel (%p224) target = $region36
        $region35: #{tpu_custom_call.1} parent=11 // pred_region
          _
        $region36: #{tpu_custom_call.1} parent=11 // pred_fallthru
          _
      $region12: #{tpu_custom_call.1} parent=5 // pred_fallthru
        _
      %p227 = scmp.lt.s32.totalorder %s16, 2
      // Predicated region
      $region37: #{tpu_custom_call.1} parent=5 // pred_check
        %p228 = pneg %p227
      $region38: #{tpu_custom_call.1} parent=5 // pred_check_branch
        %230 = sbr.rel (%p228) target = $region40
      $region39: #{tpu_custom_call.1} parent=5 // pred_region
        // Predicated region
        $region41: #{tpu_custom_call.1} parent=39 // pred_check
          %p231 = pneg %p36
        $region42: #{tpu_custom_call.1} parent=39 // pred_check_branch
          %233 = sbr.rel (%p231) target = $region44
        $region43: #{tpu_custom_call.1} parent=39 // pred_region
          %p234 = scmp.lt.s32.totalorder %s16, 1
          %s235 = scalar_select %p234, %s16, 1
          %s236 = smul.addr %s235, 8
          %s237 = scalar_lea.vmem %s0, %s236
        $region44: #{tpu_custom_call.1} parent=39 // pred_fallthru
          _
      $region40: #{tpu_custom_call.1} parent=5 // pred_fallthru
        _
      %p238 = scmp.le.s32.totalorder 1, %s16
      %p239 = scmp.lt.s32.totalorder %s16, 3
      %p240 = pnand %p238, %p239
      %p241 = pneg %p240
      // Predicated region
      $region45: #{tpu_custom_call.1} parent=5 // pred_check
        _
      $region46: #{tpu_custom_call.1} parent=5 // pred_check_branch
        %243 = sbr.rel (%p240) target = $region48
      $region47: #{tpu_custom_call.1} parent=5 // pred_region
        %s244 = ssub.s32 %s16, 1
        %p245 = scmp.lt.s32.totalorder %s21, 1
        %s246 = scalar_select %p245, %s21, 1
        %s247 = smul.addr %s246, 8
        %s248 = scalar_lea.vmem %s0, %s247
        %p249 = pneg %p42
        %p250 = pneg %p39
        %p251 = pneg %p63
        %p252 = pneg %p60
        %p253 = pneg %p84
        %p254 = pneg %p81
        %p255 = pneg %p105
        %p256 = pneg %p102
        %p257 = pneg %p126
        %p258 = pneg %p123
        %p259 = pneg %p147
        %p260 = pneg %p144
        %p261 = pneg %p168
        %p262 = pneg %p165
        %p263 = pneg %p194
        %p264 = pneg %p191
        %s265 = sand.u32 %s181, 1
        %s266 = scalar_lea.sflag [#allocation3], %s265
        %s267 = sand.u32 %s181, 1
        %s268 = smul.addr %s267, 4
        %s269 = scalar_lea.vmem [#allocation2], %s268
        %p270 = scmp.lt.s32.totalorder %s21, 1
        %s271 = scalar_select %p270, %s21, 1
        %s272 = smul.addr %s271, 8
        %s273 = scalar_lea.vmem %s0, %s272
        %v274 = vld [vmem:[%s273] sm:$0x7f]
        %v275 = vld [vmem:[%s1] sm:$0xff]
        %v276 = vld [vmem:[%s1 + $0x8] sm:$0xff]
        %v277 = vld [vmem:[%s1 + $0x10] sm:$0xff]
        %v278 = vld [vmem:[%s1 + $0x18] sm:$0xff]
        %v279 = vld [vmem:[%s2] sm:$0xff]
        %v280 = vld [vmem:[%s2 + $0x8] sm:$0xff]
        %v281 = vld [vmem:[%s2 + $0x10] sm:$0xff]
        %v282 = vld [vmem:[%s2 + $0x18] sm:$0xff]
        %284 = vset.pattern.permute.xlu0 0
        %285 = vperm.xlu0 %284, %v279
        %v286 = vpop.permute.xlu0 %285
        %289 = vset.pattern.permute.xlu0 0
        %290 = vperm.xlu0 %289, %v280
        %v291 = vpop.permute.xlu0 %290
        %294 = vset.pattern.permute.xlu0 0
        %295 = vperm.xlu0 %294, %v281
        %v296 = vpop.permute.xlu0 %295
        %299 = vset.pattern.permute.xlu0 0
        %300 = vperm.xlu0 %299, %v282
        %v301 = vpop.permute.xlu0 %300
        %vm303 = vcmask 56320
        %v305 = vsel %vm303, %v275, 0
        %v308 = vsel %vm303, %v276, 0
        %v311 = vsel %vm303, %v277, 0
        %v314 = vsel %vm303, %v278, 0
        %vm316 = vcmask 1046528
        %v318 = vsel %vm316, %v274, 0
        %320 = vmatprep.subr.mxu0 0.0
        %321 = vmatpush1.msra.mxu0 %v318
        %322 = vmatprep.subr.mxu0 0.0
        %323 = vmatpush1.msra.mxu0 0.0
        %324 = vmatprep.subr.mxu0 0.0
        %325 = vmatpush1.msra.mxu0 0.0
        %326 = vmatprep.subr.mxu0 0.0
        %327 = vmatpush1.msra.mxu0 0.0
        %328 = vmatprep.subr.mxu0 0.0
        %329 = vmatpush1.msra.mxu0 0.0
        %330 = vmatprep.subr.mxu0 0.0
        %331 = vmatpush1.msra.mxu0 0.0
        %332 = vmatprep.subr.mxu0 0.0
        %333 = vmatpush1.msra.mxu0 0.0
        %334 = vmatprep.subr.mxu0 0.0
        %335 = vmatpush1.msra.mxu0 0.0
        %336 = vmatprep.subr.mxu0 0.0
        %337 = vmatpush1.msra.mxu0 0.0
        %338 = vmatprep.subr.mxu0 0.0
        %339 = vmatpush1.msra.mxu0 0.0
        %340 = vmatprep.subr.mxu0 0.0
        %341 = vmatpush1.msra.mxu0 0.0
        %342 = vmatprep.subr.mxu0 0.0
        %343 = vmatpush1.msra.mxu0 0.0
        %344 = vmatprep.subr.mxu0 0.0
        %345 = vmatpush1.msra.mxu0 0.0
        %346 = vmatprep.subr.mxu0 0.0
        %347 = vmatpush1.msra.mxu0 0.0
        %348 = vmatprep.subr.mxu0 0.0
        %349 = vmatpush1.msra.mxu0 0.0
        %350 = vmatprep.subr.mxu0 0.0
        %351 = vmatpush1.msra.mxu0 0.0
        %352 = vmatprep.subr.mxu0 0.0
        %353 = vmatpush1.msra.mxu0 0.0
        %354 = vmatprep.subr.mxu0 0.0
        %355 = vmatpush1.msra.mxu0 0.0
        %356 = vmatprep.subr.mxu0 0.0
        %357 = vmatpush1.msra.mxu0 0.0
        %358 = vmatprep.subr.mxu0 0.0
        %359 = vmatpush1.msra.mxu0 0.0
        %360 = vmatprep.subr.mxu0 0.0
        %361 = vmatpush1.msra.mxu0 0.0
        %362 = vmatprep.subr.mxu0 0.0
        %363 = vmatpush1.msra.mxu0 0.0
        %364 = vmatprep.subr.mxu0 0.0
        %365 = vmatpush1.msra.mxu0 0.0
        %366 = vmatprep.subr.mxu0 0.0
        %367 = vmatpush1.msra.mxu0 0.0
        %368 = vmatprep.subr.mxu0 0.0
        %369 = vmatpush1.msra.mxu0 0.0
        %370 = vmatprep.subr.mxu0 0.0
        %371 = vmatpush1.msra.mxu0 0.0
        %372 = vmatprep.subr.mxu0 0.0
        %373 = vmatpush1.msra.mxu0 0.0
        %374 = vmatprep.subr.mxu0 0.0
        %375 = vmatpush1.msra.mxu0 0.0
        %376 = vmatprep.subr.mxu0 0.0
        %377 = vmatpush1.msra.mxu0 0.0
        %378 = vmatprep.subr.mxu0 0.0
        %379 = vmatpush1.msra.mxu0 0.0
        %380 = vmatprep.subr.mxu0 0.0
        %381 = vmatpush1.msra.mxu0 0.0
        %382 = vmatprep.subr.mxu0 0.0
        %383 = vmatpush1.msra.mxu0 0.0
        %384 = vmatprep.mubr.f32.mxu0 0.0
        %385 = vmatmul.mubr.f32.gmra.mrb[0].mxu0 %v305
        %v386 = vpop.f32.mrb[0].mxu0
        %v387 = vadd.f32 %v286, %v386
        %v388 = vpop.f32.mrb[0].mxu0
        %389 = vmatprep.mubr.f32.mxu0 0.0
        %390 = vmatmul.mubr.f32.gmra.mrb[0].mxu0 %v308
        %v391 = vpop.f32.mrb[0].mxu0
        %v392 = vadd.f32 %v291, %v391
        %v393 = vpop.f32.mrb[0].mxu0
        %394 = vmatprep.mubr.f32.mxu0 0.0
        %395 = vmatmul.mubr.f32.gmra.mrb[0].mxu0 %v311
        %v396 = vpop.f32.mrb[0].mxu0
        %v397 = vadd.f32 %v296, %v396
        %v398 = vpop.f32.mrb[0].mxu0
        %399 = vmatprep.mubr.f32.mxu0 0.0
        %400 = vmatmul.mubr.f32.gmra.mrb[0].mxu0 %v314
        %v401 = vpop.f32.mrb[0].mxu0
        %v402 = vadd.f32 %v301, %v401
        %v403 = vpop.f32.mrb[0].mxu0
        %404 = vdwg.mxu0
        %v405 = vsub.f32 0.0, %v387
        %v406 = vsub.f32 0.0, %v392
        %v407 = vsub.f32 0.0, %v397
        %v408 = vsub.f32 0.0, %v402
        %v409 = vmul.f32 %v405, 1.442695
        %v410 = vpow.pop %v409
        %v411 = vmul.f32 %v406, 1.442695
        %v412 = vpow.pop %v411
        %v413 = vmul.f32 %v407, 1.442695
        %v414 = vpow.pop %v413
        %v415 = vmul.f32 %v408, 1.442695
        %v416 = vpow.pop %v415
        %v417 = vadd.f32 %v410, 1.0
        %v418 = vadd.f32 %v412, 1.0
        %v419 = vadd.f32 %v414, 1.0
        %v420 = vadd.f32 %v416, 1.0
        %v421 = vrcp.pop %v417
        %v422 = vmul.f32 1.0, %v421
        %v423 = vrcp.pop %v418
        %v424 = vmul.f32 1.0, %v423
        %v425 = vrcp.pop %v419
        %v426 = vmul.f32 1.0, %v425
        %v427 = vrcp.pop %v420
        %v428 = vmul.f32 1.0, %v427
        %v429 = vmul.f32 %v387, %v422
        %v430 = vmul.f32 %v392, %v424
        %v431 = vmul.f32 %v397, %v426
        %v432 = vmul.f32 %v402, %v428
        %v433 = vld [vmem:[%s3] sm:$0xff]
        %v434 = vld [vmem:[%s3 + $0x8] sm:$0xff]
        %v435 = vld [vmem:[%s3 + $0x10] sm:$0xff]
        %v436 = vld [vmem:[%s3 + $0x18] sm:$0xff]
        %v437 = vld [vmem:[%s4] sm:$0xff]
        %v438 = vld [vmem:[%s4 + $0x8] sm:$0xff]
        %v439 = vld [vmem:[%s4 + $0x10] sm:$0xff]
        %v440 = vld [vmem:[%s4 + $0x18] sm:$0xff]
        %442 = vset.pattern.permute.xlu0 0
        %443 = vperm.xlu0 %442, %v437
        %v444 = vpop.permute.xlu0 %443
        %447 = vset.pattern.permute.xlu0 0
        %448 = vperm.xlu0 %447, %v438
        %v449 = vpop.permute.xlu0 %448
        %452 = vset.pattern.permute.xlu0 0
        %453 = vperm.xlu0 %452, %v439
        %v454 = vpop.permute.xlu0 %453
        %457 = vset.pattern.permute.xlu0 0
        %458 = vperm.xlu0 %457, %v440
        %v459 = vpop.permute.xlu0 %458
        %vm461 = vcmask 261120
        %v463 = vsel %vm461, %v433, 0
        %v466 = vsel %vm461, %v434, 0
        %v469 = vsel %vm461, %v435, 0
        %v472 = vsel %vm461, %v436, 0
        %474 = vmatprep.subr.mxu0 0.0
        %475 = vmatpush1.msra.mxu0 %v429
        %476 = vmatprep.subr.mxu0 0.0
        %477 = vmatpush1.msra.mxu0 %v430
        %478 = vmatprep.subr.mxu0 0.0
        %479 = vmatpush1.msra.mxu0 %v431
        %480 = vmatprep.subr.mxu0 0.0
        %481 = vmatpush1.msra.mxu0 %v432
        %482 = vmatprep.subr.mxu0 0.0
        %483 = vmatpush1.msra.mxu0 0.0
        %484 = vmatprep.subr.mxu0 0.0
        %485 = vmatpush1.msra.mxu0 0.0
        %486 = vmatprep.subr.mxu0 0.0
        %487 = vmatpush1.msra.mxu0 0.0
        %488 = vmatprep.subr.mxu0 0.0
        %489 = vmatpush1.msra.mxu0 0.0
        %490 = vmatprep.subr.mxu0 0.0
        %491 = vmatpush1.msra.mxu0 0.0
        %492 = vmatprep.subr.mxu0 0.0
        %493 = vmatpush1.msra.mxu0 0.0
        %494 = vmatprep.subr.mxu0 0.0
        %495 = vmatpush1.msra.mxu0 0.0
        %496 = vmatprep.subr.mxu0 0.0
        %497 = vmatpush1.msra.mxu0 0.0
        %498 = vmatprep.subr.mxu0 0.0
        %499 = vmatpush1.msra.mxu0 0.0
        %500 = vmatprep.subr.mxu0 0.0
        %501 = vmatpush1.msra.mxu0 0.0
        %502 = vmatprep.subr.mxu0 0.0
        %503 = vmatpush1.msra.mxu0 0.0
        %504 = vmatprep.subr.mxu0 0.0
        %505 = vmatpush1.msra.mxu0 0.0
        %506 = vmatprep.subr.mxu0 0.0
        %507 = vmatpush1.msra.mxu0 0.0
        %508 = vmatprep.subr.mxu0 0.0
        %509 = vmatpush1.msra.mxu0 0.0
        %510 = vmatprep.subr.mxu0 0.0
        %511 = vmatpush1.msra.mxu0 0.0
        %512 = vmatprep.subr.mxu0 0.0
        %513 = vmatpush1.msra.mxu0 0.0
        %514 = vmatprep.subr.mxu0 0.0
        %515 = vmatpush1.msra.mxu0 0.0
        %516 = vmatprep.subr.mxu0 0.0
        %517 = vmatpush1.msra.mxu0 0.0
        %518 = vmatprep.subr.mxu0 0.0
        %519 = vmatpush1.msra.mxu0 0.0
        %520 = vmatprep.subr.mxu0 0.0
        %521 = vmatpush1.msra.mxu0 0.0
        %522 = vmatprep.subr.mxu0 0.0
        %523 = vmatpush1.msra.mxu0 0.0
        %524 = vmatprep.subr.mxu0 0.0
        %525 = vmatpush1.msra.mxu0 0.0
        %526 = vmatprep.subr.mxu0 0.0
        %527 = vmatpush1.msra.mxu0 0.0
        %528 = vmatprep.subr.mxu0 0.0
        %529 = vmatpush1.msra.mxu0 0.0
        %530 = vmatprep.subr.mxu0 0.0
        %531 = vmatpush1.msra.mxu0 0.0
        %532 = vmatprep.subr.mxu0 0.0
        %533 = vmatpush1.msra.mxu0 0.0
        %534 = vmatprep.subr.mxu0 0.0
        %535 = vmatpush1.msra.mxu0 0.0
        %536 = vmatprep.subr.mxu0 0.0
        %537 = vmatpush1.msra.mxu0 0.0
        %538 = vmatprep.mubr.f32.mxu0 0.0
        %539 = vmatmul.mubr.f32.gmra.mrb[0].mxu0 %v463
        %v540 = vpop.f32.mrb[0].mxu0
        %v541 = vadd.f32 %v444, %v540
        %v542 = vpop.f32.mrb[0].mxu0
        %543 = vmatprep.mubr.f32.mxu0 0.0
        %544 = vmatmul.mubr.f32.gmra.mrb[0].mxu0 %v466
        %v545 = vpop.f32.mrb[0].mxu0
        %v546 = vadd.f32 %v449, %v545
        %v547 = vpop.f32.mrb[0].mxu0
        %548 = vmatprep.mubr.f32.mxu0 0.0
        %549 = vmatmul.mubr.f32.gmra.mrb[0].mxu0 %v469
        %v550 = vpop.f32.mrb[0].mxu0
        %v551 = vadd.f32 %v454, %v550
        %v552 = vpop.f32.mrb[0].mxu0
        %553 = vmatprep.mubr.f32.mxu0 0.0
        %554 = vmatmul.mubr.f32.gmra.mrb[0].mxu0 %v472
        %v555 = vpop.f32.mrb[0].mxu0
        %v556 = vadd.f32 %v459, %v555
        %v557 = vpop.f32.mrb[0].mxu0
        %558 = vdwg.mxu0
        %v559 = vsub.f32 0.0, %v541
        %v560 = vsub.f32 0.0, %v546
        %v561 = vsub.f32 0.0, %v551
        %v562 = vsub.f32 0.0, %v556
        %v563 = vmul.f32 %v559, 1.442695
        %v564 = vpow.pop %v563
        %v565 = vmul.f32 %v560, 1.442695
        %v566 = vpow.pop %v565
        %v567 = vmul.f32 %v561, 1.442695
        %v568 = vpow.pop %v567
        %v569 = vmul.f32 %v562, 1.442695
        %v570 = vpow.pop %v569
        %v571 = vadd.f32 %v564, 1.0
        %v572 = vadd.f32 %v566, 1.0
        %v573 = vadd.f32 %v568, 1.0
        %v574 = vadd.f32 %v570, 1.0
        %v575 = vrcp.pop %v571
        %v576 = vmul.f32 1.0, %v575
        %v577 = vrcp.pop %v572
        %v578 = vmul.f32 1.0, %v577
        %v579 = vrcp.pop %v573
        %v580 = vmul.f32 1.0, %v579
        %v581 = vrcp.pop %v574
        %v582 = vmul.f32 1.0, %v581
        %v583 = vmul.f32 %v541, %v576
        %v584 = vmul.f32 %v546, %v578
        %v585 = vmul.f32 %v551, %v580
        %v586 = vmul.f32 %v556, %v582
        %v587 = vld [vmem:[%s5] sm:$0xf]
        %v588 = vld [vmem:[%s6] sm:$0xf]
        %590 = vset.pattern.permute.xlu0 0
        %591 = vperm.xlu0 %590, %v588
        %v592 = vpop.permute.xlu0 %591
        %v595 = vsel %vm461, %v587, 0
        %597 = vmatprep.subr.mxu0 0.0
        %598 = vmatpush1.msra.mxu0 %v583
        %599 = vmatprep.subr.mxu0 0.0
        %600 = vmatpush1.msra.mxu0 %v584
        %601 = vmatprep.subr.mxu0 0.0
        %602 = vmatpush1.msra.mxu0 %v585
        %603 = vmatprep.subr.mxu0 0.0
        %604 = vmatpush1.msra.mxu0 %v586
        %605 = vmatprep.subr.mxu0 0.0
        %606 = vmatpush1.msra.mxu0 0.0
        %607 = vmatprep.subr.mxu0 0.0
        %608 = vmatpush1.msra.mxu0 0.0
        %609 = vmatprep.subr.mxu0 0.0
        %610 = vmatpush1.msra.mxu0 0.0
        %611 = vmatprep.subr.mxu0 0.0
        %612 = vmatpush1.msra.mxu0 0.0
        %613 = vmatprep.subr.mxu0 0.0
        %614 = vmatpush1.msra.mxu0 0.0
        %615 = vmatprep.subr.mxu0 0.0
        %616 = vmatpush1.msra.mxu0 0.0
        %617 = vmatprep.subr.mxu0 0.0
        %618 = vmatpush1.msra.mxu0 0.0
        %619 = vmatprep.subr.mxu0 0.0
        %620 = vmatpush1.msra.mxu0 0.0
        %621 = vmatprep.subr.mxu0 0.0
        %622 = vmatpush1.msra.mxu0 0.0
        %623 = vmatprep.subr.mxu0 0.0
        %624 = vmatpush1.msra.mxu0 0.0
        %625 = vmatprep.subr.mxu0 0.0
        %626 = vmatpush1.msra.mxu0 0.0
        %627 = vmatprep.subr.mxu0 0.0
        %628 = vmatpush1.msra.mxu0 0.0
        %629 = vmatprep.subr.mxu0 0.0
        %630 = vmatpush1.msra.mxu0 0.0
        %631 = vmatprep.subr.mxu0 0.0
        %632 = vmatpush1.msra.mxu0 0.0
        %633 = vmatprep.subr.mxu0 0.0
        %634 = vmatpush1.msra.mxu0 0.0
        %635 = vmatprep.subr.mxu0 0.0
        %636 = vmatpush1.msra.mxu0 0.0
        %637 = vmatprep.subr.mxu0 0.0
        %638 = vmatpush1.msra.mxu0 0.0
        %639 = vmatprep.subr.mxu0 0.0
        %640 = vmatpush1.msra.mxu0 0.0
        %641 = vmatprep.subr.mxu0 0.0
        %642 = vmatpush1.msra.mxu0 0.0
        %643 = vmatprep.subr.mxu0 0.0
        %644 = vmatpush1.msra.mxu0 0.0
        %645 = vmatprep.subr.mxu0 0.0
        %646 = vmatpush1.msra.mxu0 0.0
        %647 = vmatprep.subr.mxu0 0.0
        %648 = vmatpush1.msra.mxu0 0.0
        %649 = vmatprep.subr.mxu0 0.0
        %650 = vmatpush1.msra.mxu0 0.0
        %651 = vmatprep.subr.mxu0 0.0
        %652 = vmatpush1.msra.mxu0 0.0
        %653 = vmatprep.subr.mxu0 0.0
        %654 = vmatpush1.msra.mxu0 0.0
        %655 = vmatprep.subr.mxu0 0.0
        %656 = vmatpush1.msra.mxu0 0.0
        %657 = vmatprep.subr.mxu0 0.0
        %658 = vmatpush1.msra.mxu0 0.0
        %659 = vmatprep.subr.mxu0 0.0
        %660 = vmatpush1.msra.mxu0 0.0
        %661 = vmatprep.mubr.f32.mxu0 0.0
        %662 = vmatmul.mubr.f32.gmra.mrb[0].mxu0 %v595
        %v663 = vpop.f32.mrb[0].mxu0
        %v664 = vadd.f32 %v592, %v663
        %v665 = vpop.f32.mrb[0].mxu0
        %666 = vdwg.mxu0
        %667 = vst [vmem:[%s269] sm:$0xf] %v664
        %s668 = sand.u32 %s181, 1
        %s669 = scalar_lea.sflag [#allocation3], %s668
        %s670 = sand.u32 %s181, 1
        %s671 = smul.addr %s670, 4
        %s672 = scalar_lea.vmem [#allocation2], %s671
        // Predicated region
        $region49: #{tpu_custom_call.1} parent=47 // pred_check
          %p673 = pneg %p191
        $region50: #{tpu_custom_call.1} parent=47 // pred_check_branch
          %675 = sbr.rel (%p673) target = $region52
        $region51: #{tpu_custom_call.1} parent=47 // pred_region
          %s677 = ssub.s32 64, 64
          %678 = vsyncadd %s669, %s677
          %s679 = smul.addr %s21, 64
          %s680 = scalar_lea.hbm %s7, %s679
          %s682 = sshll.u32 %s672, 4
          %s683 = int_to_ptr.vmem [resolvable:$true] %s682
          %685 = dma.vmem_to_hbm [thread:$0]  %s683, 64, %s680, %s669
        $region52: #{tpu_custom_call.1} parent=47 // pred_fallthru
          _
      $region48: #{tpu_custom_call.1} parent=5 // pred_fallthru
        _
      %p686 = scmp.le.s32.totalorder 2, %s16
      // Predicated region
      $region53: #{tpu_custom_call.1} parent=5 // pred_check
        %p687 = pneg %p686
      $region54: #{tpu_custom_call.1} parent=5 // pred_check_branch
        %689 = sbr.rel (%p687) target = $region56
      $region55: #{tpu_custom_call.1} parent=5 // pred_region
        %s690 = ssub.s32 %s16, 2
        // Predicated region
        $region57: #{tpu_custom_call.1} parent=55 // pred_check
          %p691 = pneg %p197
        $region58: #{tpu_custom_call.1} parent=55 // pred_check_branch
          %693 = sbr.rel (%p691) target = $region60
        $region59: #{tpu_custom_call.1} parent=55 // pred_region
          %s694 = sand.u32 %s182, 1
          %s695 = scalar_lea.sflag [#allocation3], %s694
          %s696 = sand.u32 %s182, 1
          %s697 = smul.addr %s696, 4
          %s698 = scalar_lea.vmem [#allocation2], %s697
          %699 = dma.done %s695, 64
        $region60: #{tpu_custom_call.1} parent=55 // pred_fallthru
          _
      $region56: #{tpu_custom_call.1} parent=5 // pred_fallthru
        _
    $region6: #{tpu_custom_call.1} parent=1 // loop_footer
      %s20 = sadd.s32 1, %s16
    $region7: #{tpu_custom_call.1} parent=1 // loop_footer_branch
      %15 = sbr.rel target = $region3
    $region8: #{tpu_custom_call.1} parent=1 // loop_exit
      _
    %700 = vsyncpa [#allocation3], 1
    %s701 = scalar_lea.sflag [#allocation3], 1
    %702 = vsyncpa %s701, 1

</llo_original>
